<compile_context>
chip_gen: v7x
topology: tpu7x:2x2x1
jax: 0.10.0
libtpu: 0.0.40
codegen_flags: <defaults>
</compile_context>

<pallas_src>
import functools

import jax
import jax.numpy as jnp
from jax.experimental import pallas as pl
from jax.experimental.pallas import tpu as pltpu


# --------------------------------------------------------------------------
# Kernel A: per-image BatchNorm partial statistics for h = w1 @ x + b1.
# grid = (B, n_l_tiles); accumulate in one VMEM scratch, write once per image.
# --------------------------------------------------------------------------
def _bn_stats_kernel(x_ref, w1_ref, b1_ref, stats_ref, acc_ref):
    t = pl.program_id(1)

    @pl.when(t == 0)
    def _():
        acc_ref[...] = jnp.zeros_like(acc_ref)

    x = x_ref[0]                                                   # (C, TL) bf16
    h = jnp.dot(w1_ref[...], x, preferred_element_type=jnp.float32) + b1_ref[...]
    acc_ref[0] += h                                                # per-lane sum
    acc_ref[1] += h * h                                            # per-lane sum of squares

    @pl.when(t == pl.num_programs(1) - 1)
    def _():
        # one-time (D, 1) stores; all per-step accumulation above is lane-dense
        stats_ref[0, :, 0:1] = jnp.sum(acc_ref[0], axis=-1, keepdims=True)
        stats_ref[0, :, 1:2] = jnp.sum(acc_ref[1], axis=-1, keepdims=True)


# --------------------------------------------------------------------------
# Kernel B (grid over batch, "parallel"): fused conv-stack apply + pooled
# query + multi-head attention.  kv (D, L) never hits HBM; activations keep
# L on the lane axis.  Emits the pre-out-proj attention output `o` (padded to
# 128 lanes) and the head-averaged attention weights (1, L).
# --------------------------------------------------------------------------
def _fused_conv_attn_kernel(n_pix, n_heads, d_hidden,
                            x_ref, stats_ref, w1_ref, b1_ref, bng_ref, bnb_ref,
                            w2_ref, b2_ref, lng_ref, lnb_ref,
                            wq_ref, bq_ref, wkv_ref, bkv_ref,
                            mask_ref, o_ref, attn_ref):
    f32, bf16 = jnp.float32, jnp.bfloat16
    D = d_hidden

    x = x_ref[0]                                                   # (C, L) bf16
    h = jnp.dot(w1_ref[...], x, preferred_element_type=f32) + b1_ref[...]   # (D, L)

    # BatchNorm2d (training-mode batch stats) from the per-image partials
    stats = jnp.sum(stats_ref[...], axis=0)                        # (D, 2)
    inv_n = 1.0 / n_pix
    mean = stats[:, 0:1] * inv_n                                   # (D, 1)
    var = stats[:, 1:2] * inv_n - mean * mean
    scale = bng_ref[...] * jax.lax.rsqrt(var + 1e-5)
    shift = bnb_ref[...] - mean * scale
    h = jnp.maximum(h * scale + shift, 0.0)

    # second 1x1 conv -> LayerNorm2D (over channels, per pixel) -> ReLU
    h = jnp.dot(w2_ref[...], h.astype(bf16), preferred_element_type=f32) + b2_ref[...]
    mu = jnp.mean(h, axis=0, keepdims=True)                        # (1, L)
    dv = h - mu
    v2 = jnp.mean(dv * dv, axis=0, keepdims=True)
    kv = jnp.maximum(dv * jax.lax.rsqrt(v2 + 1e-5) * lng_ref[...] + lnb_ref[...], 0.0)

    # pooled query: q[d] = sum_l softmax_over_L(kv)[d, l] * kv[d, l]  -> (D, 1)
    m = jnp.max(kv, axis=-1, keepdims=True)
    e = jnp.exp(kv - m)
    q = jnp.sum((e / jnp.sum(e, axis=-1, keepdims=True)) * kv, axis=-1, keepdims=True)

    # fused K|V projection (one (2D,D)@(D,L) MXU op) + tiny Q projection
    kv_bf = kv.astype(bf16)
    kvp = jnp.dot(wkv_ref[...], kv_bf, preferred_element_type=f32) + bkv_ref[...]  # (2D, L)
    kp = kvp[0:D, :]
    vp = kvp[D:2 * D, :]
    qp = jnp.dot(wq_ref[...], q.astype(bf16), preferred_element_type=f32) + bq_ref[...]

    head_dim = D // n_heads
    qp = qp * (1.0 / float(head_dim) ** 0.5)                       # fold scale into q

    # per-head scores kept lane-dense: scores[h, l] = sum_{d in head h} qp[d]*kp[d,l]
    mask = mask_ref[...]                                           # (H, D)
    scores = jnp.dot(mask, qp * kp, preferred_element_type=f32)    # (H, L)
    smax = jnp.max(scores, axis=-1, keepdims=True)
    sexp = jnp.exp(scores - smax)
    sm = sexp / jnp.sum(sexp, axis=-1, keepdims=True)              # exact softmax

    # attention output: o[d] = sum_l sm[head(d), l] * vp[d, l]
    hv = jax.lax.dot_general(sm, vp, (((1,), (1,)), ((), ())),
                             preferred_element_type=f32)           # (H, D)
    o_row = jnp.sum(mask * hv, axis=0, keepdims=True)              # (1, D)

    # attn weights as nn.MultiheadAttention returns them (mean over heads)
    attn_ref[0] = jnp.mean(sm, axis=0, keepdims=True)              # (1, L) lane-dense

    # lane-dense padded write; out-proj / FFN / normalize happen batched in kernel C
    pad = o_ref.shape[-1] - D
    if pad > 0:
        o_ref[0] = jnp.concatenate([o_row, jnp.zeros((1, pad), f32)], axis=-1)
    else:
        o_ref[0] = o_row


# --------------------------------------------------------------------------
# Kernel C: batched tail (out-proj -> FFN g -> L2 normalize) + losses packed
# into a single lane-dense (1, 128) row (lane 0 = lib, 1 = contrastive, 2 = L1).
# --------------------------------------------------------------------------
def _tail_loss_kernel(n, tau, d_hidden,
                      o_ref, attn_ref, lib_ref,
                      wo_ref, bo_ref, g1_ref, gb1_ref, g2_ref, gb2_ref,
                      loss_ref):
    f32, bf16 = jnp.float32, jnp.bfloat16
    D = d_hidden

    o = o_ref[:, 0:D]                                              # (B, D)
    B = o.shape[0]

    # MultiheadAttention out-proj, PositionwiseFeedForward g, F.normalize(p=2)
    q1 = jnp.dot(o.astype(bf16), wo_ref[...], preferred_element_type=f32) + bo_ref[...]
    h1 = jnp.maximum(
        jnp.dot(q1.astype(bf16), g1_ref[...], preferred_element_type=f32) + gb1_ref[...], 0.0)
    g = jnp.dot(h1.astype(bf16), g2_ref[...], preferred_element_type=f32) + gb2_ref[...]
    qn = g * jax.lax.rsqrt(jnp.maximum(jnp.sum(g * g, axis=-1, keepdims=True), 1e-24))

    # contrastive: softmax((q q^T - 1e9 I) / tau), exact division; the reference
    # intentionally uses -log(prob + 1e-6), so keep that clipping semantics.
    sim = jax.lax.dot_general(qn, qn, (((1,), (1,)), ((), ())),
                              preferred_element_type=f32)          # (B, B)
    row = jax.lax.broadcasted_iota(jnp.int32, (B, B), 0)
    col = jax.lax.broadcasted_iota(jnp.int32, (B, B), 1)
    sim = (sim - 1e9 * (row == col).astype(f32)) * (1.0 / tau)
    smax = jnp.max(sim, axis=-1, keepdims=True)
    sexp = jnp.exp(sim - smax)
    prob = sexp / jnp.sum(sexp, axis=-1, keepdims=True)
    neglog = -jnp.log(prob + 1e-6)
    p1 = jnp.sum(jnp.where(col == row + n, neglog, 0.0), keepdims=True) / n
    p2 = jnp.sum(jnp.where(row == col + n, neglog, 0.0), keepdims=True) / n
    contrast = (p1 + p2) * 0.5                                     # (1, 1)

    # lib_loss = 1 - mean_b max_j <q_b, normalize(lib_j)>
    lib = lib_ref[...]                                             # (n_lib, D)
    libn = lib * jax.lax.rsqrt(
        jnp.maximum(jnp.sum(lib * lib, axis=-1, keepdims=True), 1e-24))
    sc = jax.lax.dot_general(qn, libn, (((1,), (1,)), ((), ())),
                             preferred_element_type=f32)           # (B, n_lib)
    lib_loss = 1.0 - jnp.sum(jnp.max(sc, axis=-1, keepdims=True), keepdims=True) / B

    # attn L1 between the two halves of the batch
    a = attn_ref[...]                                              # (B, L)
    l1 = jnp.sum(jnp.abs(a[0:n, :] - a[n:2 * n, :]), keepdims=True) / (n * a.shape[1])

    lane = jax.lax.broadcasted_iota(jnp.int32, (1, 128), 1)
    loss_ref[...] = (jnp.where(lane == 0, lib_loss, 0.0)
                     + jnp.where(lane == 1, contrast, 0.0)
                     + jnp.where(lane == 2, l1, 0.0))


# --------------------------------------------------------------------------
# Parameters (deterministic synthetic init).  Matmul weights stored in bf16
# for native MXU throughput; biases / norm params / library stay f32.
# Per-channel parameters are stored as (D, 1) columns for the lane-dense
# (channels x pixels) layout; the batched tail uses row-layout (1, D) biases.
# --------------------------------------------------------------------------
def init_params(key, d_in, d_hid, n_lib):
    keys = jax.random.split(key, 16)
    bf = jnp.bfloat16

    def w(k, shape, scale=0.1, dtype=jnp.float32):
        return (jax.random.normal(k, shape, jnp.float32) * scale).astype(dtype)

    return {
        "w1": w(keys[0], (d_hid, d_in), dtype=bf),
        "b1": w(keys[1], (d_hid, 1), 0.01),
        "bn_g": jnp.ones((d_hid, 1), jnp.float32),
        "bn_b": jnp.zeros((d_hid, 1), jnp.float32),
        "w2": w(keys[2], (d_hid, d_hid), dtype=bf),
        "b2": w(keys[3], (d_hid, 1), 0.01),
        "ln_g": jnp.ones((d_hid, 1), jnp.float32),
        "ln_b": jnp.zeros((d_hid, 1), jnp.float32),
        "wq": w(keys[4], (d_hid, d_hid), dtype=bf),
        "bq": w(keys[5], (d_hid, 1), 0.01),
        "wkv": w(keys[6], (2 * d_hid, d_hid), dtype=bf),    # K and V proj fused
        "bkv": w(keys[7], (2 * d_hid, 1), 0.01),
        "wo": w(keys[8], (d_hid, d_hid), dtype=bf),
        "bo": w(keys[9], (1, d_hid), 0.01),
        "g_w1": w(keys[10], (d_hid, 2 * d_hid), dtype=bf),
        "g_b1": w(keys[11], (1, 2 * d_hid), 0.01),
        "g_w2": w(keys[12], (2 * d_hid, d_hid), dtype=bf),
        "g_b2": jnp.zeros((1, d_hid), jnp.float32),
        "libs": w(keys[13], (n_lib, d_hid), 1.0),
    }


def _vmem_capacity_bytes():
    # per-generation VMEM (v5e/v6e: 128 MiB, v7x: 64 MiB); conservative fallback
    try:
        return int(pltpu.get_tpu_info().vmem_capacity_bytes)
    except Exception:
        return 64 * 1024 * 1024


def _pick_l_tile(L, C, D, budget_bytes):
    """Largest multiple-of-128 divisor of L fitting the VMEM budget.

    Per lane column the stats pass needs ~ 2*(C*2) bytes of double-buffered
    bf16 x tile plus 2*(D*4) bytes of f32 accumulator scratch.
    """
    bytes_per_col = 4 * C + 8 * D
    best = 0
    t = 128
    while t <= L:
        if L % t == 0 and t * bytes_per_col <= budget_bytes:
            best = t
        t += 128
    if best:
        return best
    # TODO(synk): pad/mask an L tail for huge, oddly sized images; for now use
    # a single full-L tile (lane-sparse only when L < 128).
    return L


# --------------------------------------------------------------------------
# Forward wrapper (glue: reshapes / dtype casts only — no transpose pass)
# --------------------------------------------------------------------------
def cse_forward(params, x, tau=0.1, n_heads=8):
    B, C, H, W = x.shape
    L = H * W
    D = params["b1"].shape[0]
    n_lib = params["libs"].shape[0]
    N = B * L
    n = B // 2

    # channels-first (B, C, L): free reshape (no NHWC transpose); bf16 halves the
    # HBM traffic of both x-reading kernels (they cast to bf16 anyway).
    x_bcl = x.reshape(B, C, L).astype(jnp.bfloat16)

    # head-membership mask (H, D): 1.0 where channel d belongs to head h
    head_dim = D // n_heads
    mask_hd = (jnp.arange(D)[None, :] // head_dim
               == jnp.arange(n_heads)[:, None]).astype(jnp.float32)

    cap = _vmem_capacity_bytes()
    vmem_limit = int(cap * 3 // 4)                # above scoped default, below physical
    tile_l = _pick_l_tile(L, C, D, cap // 2)
    n_tl = L // tile_l

    # ---- kernel A: per-image BN partial statistics (B axis parallel => both
    #      v7x TensorCores split this HBM-bound pass; loop on v5e/v6e) ----
    stats = pl.pallas_call(
        _bn_stats_kernel,
        out_shape=jax.ShapeDtypeStruct((B, D, 2), jnp.float32),
        grid=(B, n_tl),
        in_specs=[
            pl.BlockSpec((1, C, tile_l), lambda b, t: (b, 0, t)),
            pl.BlockSpec((D, C), lambda b, t: (0, 0)),
            pl.BlockSpec((D, 1), lambda b, t: (0, 0)),
        ],
        out_specs=pl.BlockSpec((1, D, 2), lambda b, t: (b, 0, 0)),
        scratch_shapes=[pltpu.VMEM((2, D, tile_l), jnp.float32)],
        compiler_params=pltpu.CompilerParams(
            dimension_semantics=("parallel", "arbitrary"),
            vmem_limit_bytes=vmem_limit),
    )(x_bcl, params["w1"], params["b1"])

    # ---- kernel B: fused conv-apply + pooled query + attention ----
    OPAD = max(128, ((D + 127) // 128) * 128)
    o_pad, attn_row = pl.pallas_call(
        functools.partial(_fused_conv_attn_kernel, float(N), n_heads, D),
        out_shape=(jax.ShapeDtypeStruct((B, 1, OPAD), jnp.float32),
                   jax.ShapeDtypeStruct((B, 1, L), jnp.float32)),
        grid=(B,),
        in_specs=[
            pl.BlockSpec((1, C, L), lambda b: (b, 0, 0)),
            pl.BlockSpec((B, D, 2), lambda b: (0, 0, 0)),
            pl.BlockSpec((D, C), lambda b: (0, 0)),
            pl.BlockSpec((D, 1), lambda b: (0, 0)),
            pl.BlockSpec((D, 1), lambda b: (0, 0)),
            pl.BlockSpec((D, 1), lambda b: (0, 0)),
            pl.BlockSpec((D, D), lambda b: (0, 0)),
            pl.BlockSpec((D, 1), lambda b: (0, 0)),
            pl.BlockSpec((D, 1), lambda b: (0, 0)),
            pl.BlockSpec((D, 1), lambda b: (0, 0)),
            pl.BlockSpec((D, D), lambda b: (0, 0)),
            pl.BlockSpec((D, 1), lambda b: (0, 0)),
            pl.BlockSpec((2 * D, D), lambda b: (0, 0)),
            pl.BlockSpec((2 * D, 1), lambda b: (0, 0)),
            pl.BlockSpec((n_heads, D), lambda b: (0, 0)),
        ],
        out_specs=(pl.BlockSpec((1, 1, OPAD), lambda b: (b, 0, 0)),
                   pl.BlockSpec((1, 1, L), lambda b: (b, 0, 0))),
        compiler_params=pltpu.CompilerParams(
            dimension_semantics=("parallel",),
            vmem_limit_bytes=vmem_limit),
    )(x_bcl, stats,
      params["w1"], params["b1"], params["bn_g"], params["bn_b"],
      params["w2"], params["b2"], params["ln_g"], params["ln_b"],
      params["wq"], params["bq"], params["wkv"], params["bkv"],
      mask_hd)

    # ---- kernel C: batched tail (M=B, not B serial M=1 matmuls) + losses ----
    losses = pl.pallas_call(
        functools.partial(_tail_loss_kernel, n, float(tau), D),
        out_shape=jax.ShapeDtypeStruct((1, 128), jnp.float32),
        grid=(1,),
        in_specs=[pl.BlockSpec((B, OPAD), lambda i: (0, 0)),
                  pl.BlockSpec((B, L), lambda i: (0, 0)),
                  pl.BlockSpec((n_lib, D), lambda i: (0, 0)),
                  pl.BlockSpec((D, D), lambda i: (0, 0)),
                  pl.BlockSpec((1, D), lambda i: (0, 0)),
                  pl.BlockSpec((D, 2 * D), lambda i: (0, 0)),
                  pl.BlockSpec((1, 2 * D), lambda i: (0, 0)),
                  pl.BlockSpec((2 * D, D), lambda i: (0, 0)),
                  pl.BlockSpec((1, D), lambda i: (0, 0))],
        out_specs=pl.BlockSpec((1, 128), lambda i: (0, 0)),
        compiler_params=pltpu.CompilerParams(vmem_limit_bytes=vmem_limit),
    )(o_pad.reshape(B, OPAD), attn_row.reshape(B, L), params["libs"],
      params["wo"], params["bo"], params["g_w1"], params["g_b1"],
      params["g_w2"], params["g_b2"])

    loss = {"lib_loss": losses[0, 0],
            "contrastive": losses[0, 1],
            "attn_L1_loss": losses[0, 2]}

    # attn.unflatten(-1, x.shape[2:]) -> (B, 1, H, W)
    attn_map = attn_row.reshape(B, 1, H, W)
    return attn_map, attn_map, loss


if __name__ == "__main__":
    key = jax.random.PRNGKey(0)
    B, C, H, W = 2, 4, 16, 16          # L = H*W = 256 (lane-dense tiles)
    d_hidden, n_lib = 32, 64           # 8 heads -> head_dim = 4
    kx, kp = jax.random.split(key)
    x = jax.random.normal(kx, (B, C, H, W), jnp.float32)
    params = init_params(kp, C, d_hidden, n_lib)

    attn1, attn2, loss = cse_forward(params, x, tau=0.1)
    jax.block_until_ready((attn1, attn2, loss))

    assert attn1.shape == (B, 1, H, W)
    assert all(bool(jnp.isfinite(v)) for v in loss.values())
    print("KERNEL_OK")
</pallas_src>

<mosaic_0001>
module attributes {stable_mosaic.version = 11 : i64} {
  func.func @_bn_stats_kernel(%arg0: i32, %arg1: i32, %arg2: memref<1x4x256xbf16, #tpu.memory_space<vmem>>, %arg3: memref<32x4xbf16, #tpu.memory_space<vmem>>, %arg4: memref<32x1xf32, #tpu.memory_space<vmem>>, %arg5: memref<1x32x2xf32, #tpu.memory_space<vmem>>, %arg6: memref<2x32x256xf32, #tpu.memory_space<vmem>>) attributes {dimension_semantics = [#tpu.dimension_semantics<parallel>, #tpu.dimension_semantics<arbitrary>], iteration_bounds = array<i64: 2, 1>, scalar_prefetch = 0 : i64, scratch_operands = 1 : i64, tpu.core_type = #tpu.core_type<tc>, window_params = [{transform_indices = @transform_0, window_bounds = array<i64: 1, 4, 256>}, {pipeline_mode = #tpu.pipeline_mode<synchronous>, transform_indices = @transform_1, window_bounds = array<i64: 32, 4>}, {pipeline_mode = #tpu.pipeline_mode<synchronous>, transform_indices = @transform_2, window_bounds = array<i64: 32, 1>}, {transform_indices = @transform_3, window_bounds = array<i64: 1, 32, 2>}]} {
    %c0_i32 = arith.constant 0 : i32
    %0 = arith.cmpi eq, %arg1, %c0_i32 : i32
    %1 = arith.extui %0 : i1 to i32
    %c0_i32_0 = arith.constant 0 : i32
    %2 = arith.cmpi ne, %1, %c0_i32_0 : i32
    scf.if %2 {
      %cst_20 = arith.constant 0.000000e+00 : f32
      %26 = vector.broadcast %cst_20 : f32 to vector<2x32x256xf32>
      %c0_21 = arith.constant 0 : index
      %c0_22 = arith.constant 0 : index
      %c0_23 = arith.constant 0 : index
      %27 = vector.load %arg6[%c0_21, %c0_22, %c0_23] : memref<2x32x256xf32, #tpu.memory_space<vmem>>, vector<2x32x256xf32>
      tpu.vector_store %arg6[%c0_21, %c0_22, %c0_23], %26 {strides = array<i32>} : memref<2x32x256xf32, #tpu.memory_space<vmem>>, vector<2x32x256xf32>,
    } else {
    }
    %c0 = arith.constant 0 : index
    %c0_1 = arith.constant 0 : index
    %c0_2 = arith.constant 0 : index
    %3 = vector.load %arg2[%c0, %c0_1, %c0_2] : memref<1x4x256xbf16, #tpu.memory_space<vmem>>, vector<1x4x256xbf16>
    %4 = vector.shape_cast %3 : vector<1x4x256xbf16> to vector<4x256xbf16>
    %c0_3 = arith.constant 0 : index
    %c0_4 = arith.constant 0 : index
    %5 = vector.load %arg3[%c0_3, %c0_4] : memref<32x4xbf16, #tpu.memory_space<vmem>>, vector<32x4xbf16>
    %cst = arith.constant dense<0.000000e+00> : vector<32x256xf32>
    %6 = tpu.matmul %5, %4, %cst {dimension_numbers = #tpu.dot_dimension_numbers<[1], [0], [0], [1], [0, 0, 1, 1], [], []>} : vector<32x4xbf16>, vector<4x256xbf16>, vector<32x256xf32> -> vector<32x256xf32>
    %c0_5 = arith.constant 0 : index
    %c0_6 = arith.constant 0 : index
    %7 = vector.load %arg4[%c0_5, %c0_6] : memref<32x1xf32, #tpu.memory_space<vmem>>, vector<32x1xf32>
    %8 = vector.broadcast %7 : vector<32x1xf32> to vector<32x256xf32>
    %9 = arith.addf %6, %8 : vector<32x256xf32>
    %c0_7 = arith.constant 0 : index
    %c0_8 = arith.constant 0 : index
    %c0_9 = arith.constant 0 : index
    %10 = vector.load %arg6[%c0_7, %c0_8, %c0_9] : memref<2x32x256xf32, #tpu.memory_space<vmem>>, vector<1x32x256xf32>
    %11 = vector.shape_cast %10 : vector<1x32x256xf32> to vector<32x256xf32>
    %12 = arith.addf %11, %9 : vector<32x256xf32>
    %c0_10 = arith.constant 0 : index
    %c0_11 = arith.constant 0 : index
    %c0_12 = arith.constant 0 : index
    %13 = vector.load %arg6[%c0_10, %c0_11, %c0_12] : memref<2x32x256xf32, #tpu.memory_space<vmem>>, vector<1x32x256xf32>
    %14 = vector.shape_cast %13 : vector<1x32x256xf32> to vector<32x256xf32>
    %15 = vector.shape_cast %12 : vector<32x256xf32> to vector<1x32x256xf32>
    tpu.vector_store %arg6[%c0_10, %c0_11, %c0_12], %15 {strides = array<i32>} : memref<2x32x256xf32, #tpu.memory_space<vmem>>, vector<1x32x256xf32>,
    %c1 = arith.constant 1 : index
    %c0_13 = arith.constant 0 : index
    %c0_14 = arith.constant 0 : index
    %16 = vector.load %arg6[%c1, %c0_13, %c0_14] : memref<2x32x256xf32, #tpu.memory_space<vmem>>, vector<1x32x256xf32>
    %17 = vector.shape_cast %16 : vector<1x32x256xf32> to vector<32x256xf32>
    %18 = arith.mulf %9, %9 : vector<32x256xf32>
    %19 = arith.addf %17, %18 : vector<32x256xf32>
    %c1_15 = arith.constant 1 : index
    %c0_16 = arith.constant 0 : index
    %c0_17 = arith.constant 0 : index
    %20 = vector.load %arg6[%c1_15, %c0_16, %c0_17] : memref<2x32x256xf32, #tpu.memory_space<vmem>>, vector<1x32x256xf32>
    %21 = vector.shape_cast %20 : vector<1x32x256xf32> to vector<32x256xf32>
    %22 = vector.shape_cast %19 : vector<32x256xf32> to vector<1x32x256xf32>
    tpu.vector_store %arg6[%c1_15, %c0_16, %c0_17], %22 {strides = array<i32>} : memref<2x32x256xf32, #tpu.memory_space<vmem>>, vector<1x32x256xf32>,
    %c0_i32_18 = arith.constant 0 : i32
    %23 = arith.cmpi eq, %arg1, %c0_i32_18 : i32
    %24 = arith.extui %23 : i1 to i32
    %c0_i32_19 = arith.constant 0 : i32
    %25 = arith.cmpi ne, %24, %c0_i32_19 : i32
    scf.if %25 {
      %c0_20 = arith.constant 0 : index
      %c0_21 = arith.constant 0 : index
      %c0_22 = arith.constant 0 : index
      %26 = vector.load %arg6[%c0_20, %c0_21, %c0_22] : memref<2x32x256xf32, #tpu.memory_space<vmem>>, vector<1x32x256xf32>
      %27 = vector.shape_cast %26 : vector<1x32x256xf32> to vector<32x256xf32>
      %cst_23 = arith.constant dense<0.000000e+00> : vector<32xf32>
      %28 = vector.multi_reduction <add>, %27, %cst_23 [1] : vector<32x256xf32> to vector<32xf32>
      %29 = vector.shape_cast %28 : vector<32xf32> to vector<32x1xf32>
      %c0_24 = arith.constant 0 : index
      %c0_25 = arith.constant 0 : index
      %c0_26 = arith.constant 0 : index
      %30 = vector.load %arg5[%c0_24, %c0_25, %c0_26] : memref<1x32x2xf32, #tpu.memory_space<vmem>>, vector<1x32x1xf32>
      %31 = vector.shape_cast %30 : vector<1x32x1xf32> to vector<32x1xf32>
      %32 = vector.shape_cast %29 : vector<32x1xf32> to vector<1x32x1xf32>
      tpu.vector_store %arg5[%c0_24, %c0_25, %c0_26], %32 {strides = array<i32>} : memref<1x32x2xf32, #tpu.memory_space<vmem>>, vector<1x32x1xf32>,
      %c1_27 = arith.constant 1 : index
      %c0_28 = arith.constant 0 : index
      %c0_29 = arith.constant 0 : index
      %33 = vector.load %arg6[%c1_27, %c0_28, %c0_29] : memref<2x32x256xf32, #tpu.memory_space<vmem>>, vector<1x32x256xf32>
      %34 = vector.shape_cast %33 : vector<1x32x256xf32> to vector<32x256xf32>
      %cst_30 = arith.constant dense<0.000000e+00> : vector<32xf32>
      %35 = vector.multi_reduction <add>, %34, %cst_30 [1] : vector<32x256xf32> to vector<32xf32>
      %36 = vector.shape_cast %35 : vector<32xf32> to vector<32x1xf32>
      %c0_31 = arith.constant 0 : index
      %c0_32 = arith.constant 0 : index
      %c1_33 = arith.constant 1 : index
      %37 = vector.load %arg5[%c0_31, %c0_32, %c1_33] : memref<1x32x2xf32, #tpu.memory_space<vmem>>, vector<1x32x1xf32>
      %38 = vector.shape_cast %37 : vector<1x32x1xf32> to vector<32x1xf32>
      %39 = vector.shape_cast %36 : vector<32x1xf32> to vector<1x32x1xf32>
      tpu.vector_store %arg5[%c0_31, %c0_32, %c1_33], %39 {strides = array<i32>} : memref<1x32x2xf32, #tpu.memory_space<vmem>>, vector<1x32x1xf32>,
    } else {
    }
    return
  }
  func.func @transform_0(%arg0: i32, %arg1: i32) -> (i32, i32, i32) {
    %c0_i32 = arith.constant 0 : i32
    %c0_i32_0 = arith.constant 0 : i32
    return %arg0, %c0_i32, %arg1 : i32, i32, i32
  }
  func.func @transform_1(%arg0: i32, %arg1: i32) -> (i32, i32) {
    %c0_i32 = arith.constant 0 : i32
    %c0_i32_0 = arith.constant 0 : i32
    %c0_i32_1 = arith.constant 0 : i32
    return %c0_i32, %c0_i32_0 : i32, i32
  }
  func.func @transform_2(%arg0: i32, %arg1: i32) -> (i32, i32) {
    %c0_i32 = arith.constant 0 : i32
    %c0_i32_0 = arith.constant 0 : i32
    %c0_i32_1 = arith.constant 0 : i32
    return %c0_i32, %c0_i32_0 : i32, i32
  }
  func.func @transform_3(%arg0: i32, %arg1: i32) -> (i32, i32, i32) {
    %c0_i32 = arith.constant 0 : i32
    %c0_i32_0 = arith.constant 0 : i32
    %c0_i32_1 = arith.constant 0 : i32
    return %arg0, %c0_i32, %c0_i32_0 : i32, i32, i32
  }
}

</mosaic_0001>

<llo_original>
// kernel: tpu_custom_call.1
$region0: #{tpu_custom_call.1}
  #allocation0 [shape = 'u32[]', space=smem, size = 0x4, offset = 0x4, fixed_abs, tag = 'smem constant byte address 0x4 - core index']
  #allocation1 [shape = 'u32[144,128]{1,0:T(1,128)}', space=vmem, size = 0x12000, scoped, tag = 'internal scratch']
  #allocation2 [shape = 'f32[2,32,256]{2,1,0:T(8,128)}', space=vmem, size = 0x10000, scoped, tag = 'scratch operand']
  %s0 = inlined_call_operand.vmem [shape: bf16[2,4,256], index: 0, kind: input, shape index: {}]
  %s1 = inlined_call_operand.vmem [shape: bf16[32,4], index: 1, kind: input, shape index: {}]
  %s2 = inlined_call_operand.vmem [shape: f32[32,1], index: 2, kind: input, shape index: {}]
  %s3 = inlined_call_operand.vmem [shape: f32[2,32,2], index: 3, kind: output, shape index: {}]
  %s4 = sld [smem:[#allocation0]]
  $region53: #{tpu_custom_call.1} parent=0
    _
  %s6 = ssub.s32 1, %s4
  %s7 = scalar_select 0, %s6, %s4
  loop: start=0, step=1, limit=4
  $region2: #{tpu_custom_call.1} parent=0 // loop_pre_header
    _
  $region3: #{tpu_custom_call.1} parent=0 // loop_header
    %s9 = sphi 0, %s13
    %p10 = scmp.ge.s32.totalorder %s9, 4
    %s16 = sphi 0, %s28
    %s17 = sphi 0, %s24
    %s18 = sphi 0, %s16
    %s19 = sphi 0, %s17
    %s20 = sphi 0, %s18
    %s21 = sphi 0, %s19
    %s33 = sphi 0, %s35
    %s36 = sphi 0, %s33
    %s37 = sphi 0, %s36
    %s53 = sphi 0, %s37
    %s57 = sphi 0, %s57
    %s59 = sphi 0, %s57
    %s60 = sphi 0, %s59
    %s74 = sphi 0, %s60
    %s78 = sphi 0, %s78
    %s80 = sphi 0, %s78
    %s81 = sphi 0, %s80
    %s95 = sphi 0, %s81
    %s101 = sphi 0, %s103
    %s104 = sphi 0, %s101
    %s105 = sphi 0, %s104
    %s121 = sphi 0, %s105
  $region4: #{tpu_custom_call.1} parent=0 // loop_header_branch
    %12 = sbr.rel (%p10) target = $region8
  $region5: #{tpu_custom_call.1} parent=0 // loop_body
    %s14 = ssub.s32 %s9, 1
    %s15 = ssub.s32 %s9, 2
    %s22 = sadd.s32 1, %s17
    %p23 = scmp.ge.s32.totalorder %s22, 1
    %s24 = scalar_select %p23, 0, %s22
    %s25 = sadd.s32 1, %s16
    %s26 = scalar_select %p23, %s25, %s16
    %p27 = scmp.ge.s32.totalorder %s26, 2
    %s28 = scalar_select %p27, 0, %s26
    %s29 = ssub.s32 %s16, %s28
    %s30 = ssub.s32 %s17, %s24
    %s31 = sor.u32 %s29, %s30
    %p32 = scmp.eq.s32.totalorder %s31, 0
    %s34 = sadd.s32 %s33, 1
    %s35 = scalar_select %p32, %s33, %s34
    %p38 = pneg %p32
    %p39 = scmp.eq.s32.totalorder %s9, 1
    %p40 = por %p38, %p39
    %p41 = scmp.ne.s32.totalorder %s33, %s36
    %p42 = scmp.eq.s32.totalorder %s9, 0
    %p43 = por %p41, %p42
    %p44 = scmp.ne.s32.totalorder %s33, %s36
    %p45 = scmp.eq.s32.totalorder %s14, 1
    %p46 = por %p44, %p45
    %p47 = scmp.ne.s32.totalorder %s36, %s37
    %p48 = scmp.eq.s32.totalorder %s14, 0
    %p49 = por %p47, %p48
    %p50 = scmp.ne.s32.totalorder %s36, %s37
    %p51 = scmp.eq.s32.totalorder %s15, 1
    %p52 = por %p50, %p51
    %p54 = scmp.ne.s32.totalorder %s37, %s53
    %p55 = scmp.eq.s32.totalorder %s15, 0
    %p56 = por %p54, %p55
    %s58 = sadd.s32 %s57, 1
    %p61 = scmp.eq.s32.totalorder %s9, 1
    %p62 = scmp.ne.s32.totalorder %s57, %s59
    %p63 = scmp.eq.s32.totalorder %s9, 0
    %p64 = por %p62, %p63
    %p65 = scmp.ne.s32.totalorder %s57, %s59
    %p66 = scmp.eq.s32.totalorder %s14, 1
    %p67 = por %p65, %p66
    %p68 = scmp.ne.s32.totalorder %s59, %s60
    %p69 = scmp.eq.s32.totalorder %s14, 0
    %p70 = por %p68, %p69
    %p71 = scmp.ne.s32.totalorder %s59, %s60
    %p72 = scmp.eq.s32.totalorder %s15, 1
    %p73 = por %p71, %p72
    %p75 = scmp.ne.s32.totalorder %s60, %s74
    %p76 = scmp.eq.s32.totalorder %s15, 0
    %p77 = por %p75, %p76
    %s79 = sadd.s32 %s78, 1
    %p82 = scmp.eq.s32.totalorder %s9, 1
    %p83 = scmp.ne.s32.totalorder %s78, %s80
    %p84 = scmp.eq.s32.totalorder %s9, 0
    %p85 = por %p83, %p84
    %p86 = scmp.ne.s32.totalorder %s78, %s80
    %p87 = scmp.eq.s32.totalorder %s14, 1
    %p88 = por %p86, %p87
    %p89 = scmp.ne.s32.totalorder %s80, %s81
    %p90 = scmp.eq.s32.totalorder %s14, 0
    %p91 = por %p89, %p90
    %p92 = scmp.ne.s32.totalorder %s80, %s81
    %p93 = scmp.eq.s32.totalorder %s15, 1
    %p94 = por %p92, %p93
    %p96 = scmp.ne.s32.totalorder %s81, %s95
    %p97 = scmp.eq.s32.totalorder %s15, 0
    %p98 = por %p96, %p97
    %s99 = ssub.s32 %s16, %s28
    %p100 = scmp.eq.s32.totalorder %s99, 0
    %s102 = sadd.s32 %s101, 1
    %s103 = scalar_select %p100, %s101, %s102
    %p106 = pneg %p100
    %p107 = scmp.eq.s32.totalorder %s9, 1
    %p108 = por %p106, %p107
    %p109 = scmp.ne.s32.totalorder %s101, %s104
    %p110 = scmp.eq.s32.totalorder %s9, 0
    %p111 = por %p109, %p110
    %p112 = scmp.ne.s32.totalorder %s101, %s104
    %p113 = scmp.eq.s32.totalorder %s14, 1
    %p114 = por %p112, %p113
    %p115 = scmp.ne.s32.totalorder %s104, %s105
    %p116 = scmp.eq.s32.totalorder %s14, 0
    %p117 = por %p115, %p116
    %p118 = scmp.ne.s32.totalorder %s104, %s105
    %p119 = scmp.eq.s32.totalorder %s15, 1
    %p120 = por %p118, %p119
    %p122 = scmp.ne.s32.totalorder %s105, %s121
    %p123 = scmp.eq.s32.totalorder %s15, 0
    %p124 = por %p122, %p123
    %p125 = scmp.le.s32.totalorder 1, %s9
    %p126 = scmp.lt.s32.totalorder %s9, 3
    %p127 = pnand %p125, %p126
    %p128 = pneg %p127
    // Predicated region
    $region9: #{tpu_custom_call.1} parent=5 // pred_check
      _
    $region10: #{tpu_custom_call.1} parent=5 // pred_check_branch
      %130 = sbr.rel (%p127) target = $region12
    $region11: #{tpu_custom_call.1} parent=5 // pred_region
      %s131 = ssub.s32 %s9, 1
      // Predicated region
      $region13: #{tpu_custom_call.1} parent=11 // pred_check
        %p132 = pneg %p70
      $region14: #{tpu_custom_call.1} parent=11 // pred_check_branch
        %134 = sbr.rel (%p132) target = $region16
      $region15: #{tpu_custom_call.1} parent=11 // pred_region
        _
      $region16: #{tpu_custom_call.1} parent=11 // pred_fallthru
        _
      // Predicated region
      $region17: #{tpu_custom_call.1} parent=11 // pred_check
        %p135 = pneg %p91
      $region18: #{tpu_custom_call.1} parent=11 // pred_check_branch
        %137 = sbr.rel (%p135) target = $region20
      $region19: #{tpu_custom_call.1} parent=11 // pred_region
        _
      $region20: #{tpu_custom_call.1} parent=11 // pred_fallthru
        _
    $region12: #{tpu_custom_call.1} parent=5 // pred_fallthru
      _
    %p138 = scmp.lt.s32.totalorder %s9, 2
    // Predicated region
    $region21: #{tpu_custom_call.1} parent=5 // pred_check
      %p139 = pneg %p138
    $region22: #{tpu_custom_call.1} parent=5 // pred_check_branch
      %141 = sbr.rel (%p139) target = $region24
    $region23: #{tpu_custom_call.1} parent=5 // pred_region
      // Predicated region
      $region25: #{tpu_custom_call.1} parent=23 // pred_check
        %p142 = pneg %p43
      $region26: #{tpu_custom_call.1} parent=23 // pred_check_branch
        %144 = sbr.rel (%p142) target = $region28
      $region27: #{tpu_custom_call.1} parent=23 // pred_region
        %s145 = smul.u32 2, %s17
        %p146 = scmp.lt.s32.totalorder %s16, 1
        %s147 = scalar_select %p146, %s16, 1
        %p148 = scmp.lt.s32.totalorder %s145, 1
        %s149 = scalar_select %p148, %s145, 1
        %s150 = smul.addr %s147, 2
        %s151 = sadd.s32 %s149, %s150
        %s152 = smul.addr %s151, 2
        %s153 = scalar_lea.vmem %s0, %s152
        %s154 = smul.u32 2, %s17
      $region28: #{tpu_custom_call.1} parent=23 // pred_fallthru
        _
    $region24: #{tpu_custom_call.1} parent=5 // pred_fallthru
      _
    %p155 = scmp.le.s32.totalorder 1, %s9
    %p156 = scmp.lt.s32.totalorder %s9, 3
    %p157 = pnand %p155, %p156
    %p158 = pneg %p157
    // Predicated region
    $region29: #{tpu_custom_call.1} parent=5 // pred_check
      _
    $region30: #{tpu_custom_call.1} parent=5 // pred_check_branch
      %160 = sbr.rel (%p157) target = $region32
    $region31: #{tpu_custom_call.1} parent=5 // pred_region
      %s161 = ssub.s32 %s9, 1
      %s162 = smul.u32 2, %s19
      %p163 = scmp.lt.s32.totalorder %s18, 1
      %s164 = scalar_select %p163, %s18, 1
      %p165 = scmp.lt.s32.totalorder %s162, 1
      %s166 = scalar_select %p165, %s162, 1
      %s167 = smul.addr %s164, 2
      %s168 = sadd.s32 %s166, %s167
      %s169 = smul.addr %s168, 2
      %s170 = scalar_lea.vmem %s0, %s169
      %p171 = pneg %p49
      %p172 = pneg %p46
      %p173 = pneg %p70
      %p174 = pneg %p67
      %p175 = pneg %p91
      %p176 = pneg %p88
      %p177 = pneg %p117
      %p178 = pneg %p114
      %p179 = scmp.lt.s32.totalorder %s18, 1
      %s180 = scalar_select %p179, %s18, 1
      %s181 = smul.addr %s180, 4
      %s182 = smul.addr %s181, 8
      %s183 = scalar_lea.vmem %s3, %s182
      %s184 = smul.u32 2, %s19
      %p185 = scmp.lt.s32.totalorder %s18, 1
      %s186 = scalar_select %p185, %s18, 1
      %p187 = scmp.lt.s32.totalorder %s184, 1
      %s188 = scalar_select %p187, %s184, 1
      %s189 = smul.addr %s186, 2
      %s190 = sadd.s32 %s188, %s189
      %s191 = smul.addr %s190, 2
      %s192 = scalar_lea.vmem %s0, %s191
      %s193 = smul.u32 2, %s19
      %p194 = scmp.lt.s32.totalorder %s18, 1
      %s195 = scalar_select %p194, %s18, 1
      %s196 = smul.addr %s195, 4
      %s197 = smul.addr %s196, 8
      %s198 = scalar_lea.vmem %s3, %s197
      %p200 = scmp.eq.s32.totalorder %s19, 0
      // Predicated region
      $region33: #{tpu_custom_call.1} parent=31 // pred_check
        %p201 = pneg %p200
      $region34: #{tpu_custom_call.1} parent=31 // pred_check_branch
        %203 = sbr.rel (%p201) target = $region36
      $region35: #{tpu_custom_call.1} parent=31 // pred_region
        %204 = vst [vmem:[#allocation2] sm:$0xff] 0.0
        %205 = vst [vmem:[#allocation2 + $0x8] sm:$0xff] 0.0
        %206 = vst [vmem:[#allocation2 + $0x10] sm:$0xff] 0.0
        %207 = vst [vmem:[#allocation2 + $0x18] sm:$0xff] 0.0
        %208 = vst [vmem:[#allocation2 + $0x20] sm:$0xff] 0.0
        %209 = vst [vmem:[#allocation2 + $0x28] sm:$0xff] 0.0
        %210 = vst [vmem:[#allocation2 + $0x30] sm:$0xff] 0.0
        %211 = vst [vmem:[#allocation2 + $0x38] sm:$0xff] 0.0
        %212 = vst [vmem:[#allocation2 + $0x40] sm:$0xff] 0.0
        %213 = vst [vmem:[#allocation2 + $0x48] sm:$0xff] 0.0
        %214 = vst [vmem:[#allocation2 + $0x50] sm:$0xff] 0.0
        %215 = vst [vmem:[#allocation2 + $0x58] sm:$0xff] 0.0
        %216 = vst [vmem:[#allocation2 + $0x60] sm:$0xff] 0.0
        %217 = vst [vmem:[#allocation2 + $0x68] sm:$0xff] 0.0
        %218 = vst [vmem:[#allocation2 + $0x70] sm:$0xff] 0.0
        %219 = vst [vmem:[#allocation2 + $0x78] sm:$0xff] 0.0
      $region36: #{tpu_custom_call.1} parent=31 // pred_fallthru
        _
      %v220 = vld [vmem:[%s192] sm:$0xf]
      %v221 = vld [vmem:[%s1] sm:$0xf]
      %v222 = vld [vmem:[%s1 + $0x4] sm:$0xf]
      %v223 = vld [vmem:[%s1 + $0x8] sm:$0xf]
      %v224 = vld [vmem:[%s1 + $0xc] sm:$0xf]
      %v225 = vld [vmem:[%s2] sm:$0xff]
      %v226 = vld [vmem:[%s2 + $0x8] sm:$0xff]
      %v227 = vld [vmem:[%s2 + $0x10] sm:$0xff]
      %v228 = vld [vmem:[%s2 + $0x18] sm:$0xff]
      %230 = vset.pattern.permute.xlu0 0
      %231 = vperm.xlu0 %230, %v225
      %v232 = vpop.permute.xlu0 %231
      %235 = vset.pattern.permute.xlu0 0
      %236 = vperm.xlu0 %235, %v226
      %v237 = vpop.permute.xlu0 %236
      %240 = vset.pattern.permute.xlu0 0
      %241 = vperm.xlu0 %240, %v227
      %v242 = vpop.permute.xlu0 %241
      %245 = vset.pattern.permute.xlu0 0
      %246 = vperm.xlu0 %245, %v228
      %v247 = vpop.permute.xlu0 %246
      %v253 = vunpack.c.l.b16 %v221
      %v254 = vunpack.c.l.b16 %v222
      %v255 = vunpack.c.l.b16 %v223
      %v256 = vunpack.c.l.b16 %v224
      %v257 = vpack.c.b16 %v254, %v253
      %v258 = vpack.c.b16 %v256, %v255
      %v261 = vunpack.c.l.s4 1983009808
      %v262 = vunpack.c.0.s8 %v261
      %v263 = vlaneseq
      %v264 = vshrl.u32 %v263, 7
      %v265 = vsub.s32 %v262, %v264
      %v266 = vrot.slane %v220, %v265
      %v267 = vcombine.high %v266, %v266
      %vm268 = vcmask 31744
      %v270 = vsel %vm268, %v257, 0
      %v273 = vsel %vm268, %v258, 0
      %vm275 = vcmask 1041408
      %v277 = vsel %vm275, %v266, 0
      %v280 = vsel %vm275, %v267, 0
      %282 = vmatprep.subr.bf16.mxu0 %v280
      %283 = vmatpush1.bf16.msra.mxu0 %v277
      %284 = vmatprep.subr.bf16.mxu0 0
      %285 = vmatpush1.bf16.msra.mxu0 0
      %286 = vmatprep.subr.bf16.mxu0 0
      %287 = vmatpush1.bf16.msra.mxu0 0
      %288 = vmatprep.subr.bf16.mxu0 0
      %289 = vmatpush1.bf16.msra.mxu0 0
      %290 = vmatprep.subr.bf16.mxu0 0
      %291 = vmatpush1.bf16.msra.mxu0 0
      %292 = vmatprep.subr.bf16.mxu0 0
      %293 = vmatpush1.bf16.msra.mxu0 0
      %294 = vmatprep.subr.bf16.mxu0 0
      %295 = vmatpush1.bf16.msra.mxu0 0
      %296 = vmatprep.subr.bf16.mxu0 0
      %297 = vmatpush1.bf16.msra.mxu0 0
      %298 = vmatprep.subr.bf16.mxu0 0
      %299 = vmatpush1.bf16.msra.mxu0 0
      %300 = vmatprep.subr.bf16.mxu0 0
      %301 = vmatpush1.bf16.msra.mxu0 0
      %302 = vmatprep.subr.bf16.mxu0 0
      %303 = vmatpush1.bf16.msra.mxu0 0
      %304 = vmatprep.subr.bf16.mxu0 0
      %305 = vmatpush1.bf16.msra.mxu0 0
      %306 = vmatprep.subr.bf16.mxu0 0
      %307 = vmatpush1.bf16.msra.mxu0 0
      %308 = vmatprep.subr.bf16.mxu0 0
      %309 = vmatpush1.bf16.msra.mxu0 0
      %310 = vmatprep.subr.bf16.mxu0 0
      %311 = vmatpush1.bf16.msra.mxu0 0
      %312 = vmatprep.subr.bf16.mxu0 0
      %313 = vmatpush1.bf16.msra.mxu0 0
      %314 = vmatprep.mubr.bf16.mxu0 0
      %315 = vmatmul.mubr.bf16.gmra.mrb[0].mxu0 %v270
      %v316 = vpop.f32.mrb[0].mxu0
      %v317 = vadd.f32 %v232, %v316
      %v318 = vpop.f32.mrb[0].mxu0
      %v319 = vadd.f32 %v232, %v318
      %v320 = vpop.f32.mrb[0].mxu0
      %v321 = vadd.f32 %v237, %v320
      %v322 = vpop.f32.mrb[0].mxu0
      %v323 = vadd.f32 %v237, %v322
      %324 = vmatprep.mubr.bf16.mxu0 0
      %325 = vmatmul.mubr.bf16.gmra.mrb[0].mxu0 %v273
      %v326 = vpop.f32.mrb[0].mxu0
      %v327 = vadd.f32 %v242, %v326
      %v328 = vpop.f32.mrb[0].mxu0
      %v329 = vadd.f32 %v242, %v328
      %v330 = vpop.f32.mrb[0].mxu0
      %v331 = vadd.f32 %v247, %v330
      %v332 = vpop.f32.mrb[0].mxu0
      %v333 = vadd.f32 %v247, %v332
      %334 = vdwg.mxu0
      %v335 = vld [vmem:[#allocation2] sm:$0xff]
      %v336 = vld [vmem:[#allocation2 + $0x8] sm:$0xff]
      %v337 = vld [vmem:[#allocation2 + $0x10] sm:$0xff]
      %v338 = vld [vmem:[#allocation2 + $0x18] sm:$0xff]
      %v339 = vld [vmem:[#allocation2 + $0x20] sm:$0xff]
      %v340 = vld [vmem:[#allocation2 + $0x28] sm:$0xff]
      %v341 = vld [vmem:[#allocation2 + $0x30] sm:$0xff]
      %v342 = vld [vmem:[#allocation2 + $0x38] sm:$0xff]
      %v343 = vadd.f32 %v335, %v317
      %v344 = vadd.f32 %v336, %v319
      %v345 = vadd.f32 %v337, %v321
      %v346 = vadd.f32 %v338, %v323
      %v347 = vadd.f32 %v339, %v327
      %v348 = vadd.f32 %v340, %v329
      %v349 = vadd.f32 %v341, %v331
      %v350 = vadd.f32 %v342, %v333
      %351 = vst [vmem:[#allocation2] sm:$0xff] %v343
      %352 = vst [vmem:[#allocation2 + $0x8] sm:$0xff] %v344
      %353 = vst [vmem:[#allocation2 + $0x10] sm:$0xff] %v345
      %354 = vst [vmem:[#allocation2 + $0x18] sm:$0xff] %v346
      %355 = vst [vmem:[#allocation2 + $0x20] sm:$0xff] %v347
      %356 = vst [vmem:[#allocation2 + $0x28] sm:$0xff] %v348
      %357 = vst [vmem:[#allocation2 + $0x30] sm:$0xff] %v349
      %358 = vst [vmem:[#allocation2 + $0x38] sm:$0xff] %v350
      %s359 = scalar_lea.vmem [#allocation2], 64
      %v360 = vld [vmem:[%s359] sm:$0xff]
      %v361 = vld [vmem:[%s359 + $0x8] sm:$0xff]
      %v362 = vld [vmem:[%s359 + $0x10] sm:$0xff]
      %v363 = vld [vmem:[%s359 + $0x18] sm:$0xff]
      %v364 = vld [vmem:[%s359 + $0x20] sm:$0xff]
      %v365 = vld [vmem:[%s359 + $0x28] sm:$0xff]
      %v366 = vld [vmem:[%s359 + $0x30] sm:$0xff]
      %v367 = vld [vmem:[%s359 + $0x38] sm:$0xff]
      %v368 = vmul.f32 %v317, %v317
      %v369 = vmul.f32 %v319, %v319
      %v370 = vmul.f32 %v321, %v321
      %v371 = vmul.f32 %v323, %v323
      %v372 = vmul.f32 %v327, %v327
      %v373 = vmul.f32 %v329, %v329
      %v374 = vmul.f32 %v331, %v331
      %v375 = vmul.f32 %v333, %v333
      %v376 = vadd.f32 %v360, %v368
      %v377 = vadd.f32 %v361, %v369
      %v378 = vadd.f32 %v362, %v370
      %v379 = vadd.f32 %v363, %v371
      %v380 = vadd.f32 %v364, %v372
      %v381 = vadd.f32 %v365, %v373
      %v382 = vadd.f32 %v366, %v374
      %v383 = vadd.f32 %v367, %v375
      %384 = vst [vmem:[%s359] sm:$0xff] %v376
      %385 = vst [vmem:[%s359 + $0x8] sm:$0xff] %v377
      %386 = vst [vmem:[%s359 + $0x10] sm:$0xff] %v378
      %387 = vst [vmem:[%s359 + $0x18] sm:$0xff] %v379
      %388 = vst [vmem:[%s359 + $0x20] sm:$0xff] %v380
      %389 = vst [vmem:[%s359 + $0x28] sm:$0xff] %v381
      %390 = vst [vmem:[%s359 + $0x30] sm:$0xff] %v382
      %391 = vst [vmem:[%s359 + $0x38] sm:$0xff] %v383
      // Predicated region
      $region37: #{tpu_custom_call.1} parent=31 // pred_check
        %p392 = pneg %p200
      $region38: #{tpu_custom_call.1} parent=31 // pred_check_branch
        %394 = sbr.rel (%p392) target = $region40
      $region39: #{tpu_custom_call.1} parent=31 // pred_region
        %v395 = vld [vmem:[#allocation2] sm:$0xff]
        %v396 = vld [vmem:[#allocation2 + $0x8] sm:$0xff]
        %v397 = vld [vmem:[#allocation2 + $0x10] sm:$0xff]
        %v398 = vld [vmem:[#allocation2 + $0x18] sm:$0xff]
        %v399 = vld [vmem:[#allocation2 + $0x20] sm:$0xff]
        %v400 = vld [vmem:[#allocation2 + $0x28] sm:$0xff]
        %v401 = vld [vmem:[#allocation2 + $0x30] sm:$0xff]
        %v402 = vld [vmem:[#allocation2 + $0x38] sm:$0xff]
        %v403 = vadd.f32 %v395, %v396
        %404 = vadd.xlane.f32.xlu0 %v403
        %v405 = vpop.xlane.xlu0 %404
        %v406 = vadd.f32 %v397, %v398
        %407 = vadd.xlane.f32.xlu0 %v406
        %v408 = vpop.xlane.xlu0 %407
        %v409 = vadd.f32 %v399, %v400
        %410 = vadd.xlane.f32.xlu0 %v409
        %v411 = vpop.xlane.xlu0 %410
        %v412 = vadd.f32 %v401, %v402
        %413 = vadd.xlane.f32.xlu0 %v412
        %v414 = vpop.xlane.xlu0 %413
        %vm415 = vcmask 7168
        %416 = vst.msk [vmem:[%s198] sm:$0xff] %vm415, %v405
        %417 = vst.msk [vmem:[%s198 + $0x8] sm:$0xff] %vm415, %v408
        %418 = vst.msk [vmem:[%s198 + $0x10] sm:$0xff] %vm415, %v411
        %419 = vst.msk [vmem:[%s198 + $0x18] sm:$0xff] %vm415, %v414
        %v420 = vld [vmem:[%s359] sm:$0xff]
        %v421 = vld [vmem:[%s359 + $0x8] sm:$0xff]
        %v422 = vld [vmem:[%s359 + $0x10] sm:$0xff]
        %v423 = vld [vmem:[%s359 + $0x18] sm:$0xff]
        %v424 = vld [vmem:[%s359 + $0x20] sm:$0xff]
        %v425 = vld [vmem:[%s359 + $0x28] sm:$0xff]
        %v426 = vld [vmem:[%s359 + $0x30] sm:$0xff]
        %v427 = vld [vmem:[%s359 + $0x38] sm:$0xff]
        %v428 = vadd.f32 %v420, %v421
        %429 = vadd.xlane.f32.xlu0 %v428
        %v430 = vpop.xlane.xlu0 %429
        %v431 = vadd.f32 %v422, %v423
        %432 = vadd.xlane.f32.xlu0 %v431
        %v433 = vpop.xlane.xlu0 %432
        %v434 = vadd.f32 %v424, %v425
        %435 = vadd.xlane.f32.xlu0 %v434
        %v436 = vpop.xlane.xlu0 %435
        %v437 = vadd.f32 %v426, %v427
        %438 = vadd.xlane.f32.xlu0 %v437
        %v439 = vpop.xlane.xlu0 %438
        %vm440 = vcmask 15368
        %441 = vst.msk [vmem:[%s198] sm:$0xff] %vm440, %v430
        %442 = vst.msk [vmem:[%s198 + $0x8] sm:$0xff] %vm440, %v433
        %443 = vst.msk [vmem:[%s198 + $0x10] sm:$0xff] %vm440, %v436
        %444 = vst.msk [vmem:[%s198 + $0x18] sm:$0xff] %vm440, %v439
      $region40: #{tpu_custom_call.1} parent=31 // pred_fallthru
        _
      %p445 = scmp.lt.s32.totalorder %s18, 1
      %s446 = scalar_select %p445, %s18, 1
      %s447 = smul.addr %s446, 4
      %s448 = smul.addr %s447, 8
      %s449 = scalar_lea.vmem %s3, %s448
      // Predicated region
      $region41: #{tpu_custom_call.1} parent=31 // pred_check
        %p450 = pneg %p114
      $region42: #{tpu_custom_call.1} parent=31 // pred_check_branch
        %452 = sbr.rel (%p450) target = $region44
      $region43: #{tpu_custom_call.1} parent=31 // pred_region
        _
      $region44: #{tpu_custom_call.1} parent=31 // pred_fallthru
        _
    $region32: #{tpu_custom_call.1} parent=5 // pred_fallthru
      _
    %p453 = scmp.le.s32.totalorder 2, %s9
    // Predicated region
    $region45: #{tpu_custom_call.1} parent=5 // pred_check
      %p454 = pneg %p453
    $region46: #{tpu_custom_call.1} parent=5 // pred_check_branch
      %456 = sbr.rel (%p454) target = $region48
    $region47: #{tpu_custom_call.1} parent=5 // pred_region
      %s457 = ssub.s32 %s9, 2
      // Predicated region
      $region49: #{tpu_custom_call.1} parent=47 // pred_check
        %p458 = pneg %p120
      $region50: #{tpu_custom_call.1} parent=47 // pred_check_branch
        %460 = sbr.rel (%p458) target = $region52
      $region51: #{tpu_custom_call.1} parent=47 // pred_region
        %p461 = scmp.lt.s32.totalorder %s20, 1
        %s462 = scalar_select %p461, %s20, 1
        %s463 = smul.addr %s462, 4
        %s464 = smul.addr %s463, 8
        %s465 = scalar_lea.vmem %s3, %s464
      $region52: #{tpu_custom_call.1} parent=47 // pred_fallthru
        _
    $region48: #{tpu_custom_call.1} parent=5 // pred_fallthru
      _
  $region6: #{tpu_custom_call.1} parent=0 // loop_footer
    %s13 = sadd.s32 1, %s9
  $region7: #{tpu_custom_call.1} parent=0 // loop_footer_branch
    %8 = sbr.rel target = $region3
  $region8: #{tpu_custom_call.1} parent=0 // loop_exit
    _

</llo_original>
